<compile_context>
chip_gen: v7x
topology: tpu7x:2x2x1
jax: 0.10.0
libtpu: 0.0.40
codegen_flags: <defaults>
</compile_context>

<pallas_src>
import functools

import jax
import jax.numpy as jnp
from jax.experimental import pallas as pl
from jax.experimental.pallas import tpu as pltpu

LANE = 128            # TPU lane width: hidden/output feature dims padded to this.
MAX_TILE_B = 2048     # Batch rows per grid step (amortizes ~0.35us/step overhead).
SPLIT_THRESHOLD_B = 256  # Above this, force >=2 grid steps for v7x megacore sharding.


def _round_up(x, m):
    return (x + m - 1) // m * m


# --------------------------------------------------------------------------
# Kernel: one batch tile of the full 3-layer forward, fully in VMEM.
# --------------------------------------------------------------------------
def striatum_kernel(img_ref, c12_ref,
                    w_img_ref, w_c_ref, b12_ref,
                    w3_ref, b3_ref,
                    out_ref):
    img = img_ref[...].astype(jnp.bfloat16)   # no-op if producer already bf16
    c12 = c12_ref[...].astype(jnp.bfloat16)

    # [h1 | h2] in one (tile_b, 2*hp) tensor:
    #   one N=256 MXU matmul over the shared image LHS
    #   + one tiny block-diagonal matmul for the fused cortical inputs.
    h = (jnp.dot(img, w_img_ref[...], preferred_element_type=jnp.float32)
         + jnp.dot(c12, w_c_ref[...], preferred_element_type=jnp.float32)
         + b12_ref[...])

    # logits = [h1 | h2] @ stacked(W3) + b3 : one K=256, N=128 matmul.
    logits = (jnp.dot(h.astype(jnp.bfloat16), w3_ref[...],
                      preferred_element_type=jnp.float32)
              + b3_ref[...])
    out_ref[...] = logits.astype(out_ref.dtype)


# --------------------------------------------------------------------------
# One-time parameter init + preprocessing (NOT in the per-call path).
# --------------------------------------------------------------------------
def init_params(key, img_size, in_channels, cort1_dim, cort2_dim, output, h_size):
    """PyTorch nn.Linear-style init: W in (out, in), uniform +/- 1/sqrt(fan_in)."""
    img_overall = img_size * img_size * in_channels
    d1 = img_overall + cort1_dim
    d2 = img_overall + cort2_dim
    keys = jax.random.split(key, 6)

    def linear_init(kw, kb, fan_in, fan_out):
        bound = 1.0 / jnp.sqrt(fan_in)
        w = jax.random.uniform(kw, (fan_out, fan_in), jnp.float32, -bound, bound)
        b = jax.random.uniform(kb, (fan_out,), jnp.float32, -bound, bound)
        return w, b

    w1, b1 = linear_init(keys[0], keys[1], d1, h_size)
    w2, b2 = linear_init(keys[2], keys[3], d2, h_size)
    w3, b3 = linear_init(keys[4], keys[5], 2 * h_size, output)
    return {"w1": w1, "b1": b1, "w2": w2, "b2": b2, "w3": w3, "b3": b3}


def prepare_kernel_params(params, img_feat, cort1_dim, cort2_dim):
    """Fuse + pad weights once.  Exact decomposition of the PyTorch forward:
       * W1/W2 img halves -> single (img_feat, 2*hp) weight (h1 lanes 0..hp-1,
         h2 lanes hp..2hp-1)
       * W1/W2 cort halves -> block-diagonal (c1+c2, 2*hp) weight
       * W3 -> stacked (2*hp, outp) weight
       All padded lanes/rows are exact zeros; weights cast to bf16."""
    h = int(params["b1"].shape[0])
    out = int(params["b3"].shape[0])
    hp = _round_up(h, LANE)
    outp = _round_up(out, LANE)

    w1_t = params["w1"].T            # (img_feat + c1, h)
    w2_t = params["w2"].T            # (img_feat + c2, h)
    w3_t = params["w3"].T            # (2h, out)

    w_img = jnp.zeros((img_feat, 2 * hp), jnp.float32)
    w_img = w_img.at[:, :h].set(w1_t[:img_feat])
    w_img = w_img.at[:, hp:hp + h].set(w2_t[:img_feat])

    d_c = cort1_dim + cort2_dim
    w_c = jnp.zeros((d_c, 2 * hp), jnp.float32)
    w_c = w_c.at[:cort1_dim, :h].set(w1_t[img_feat:])
    w_c = w_c.at[cort1_dim:, hp:hp + h].set(w2_t[img_feat:])

    b12 = jnp.zeros((1, 2 * hp), jnp.float32)
    b12 = b12.at[0, :h].set(params["b1"])
    b12 = b12.at[0, hp:hp + h].set(params["b2"])

    w3 = jnp.zeros((2 * hp, outp), jnp.float32)
    w3 = w3.at[:h, :out].set(w3_t[:h])
    w3 = w3.at[hp:hp + h, :out].set(w3_t[h:])

    b3 = jnp.zeros((1, outp), jnp.float32)
    b3 = b3.at[0, :out].set(params["b3"])

    kp = {
        "w_img": w_img.astype(jnp.bfloat16),
        "w_c": w_c.astype(jnp.bfloat16),
        "b12": b12,
        "w3": w3.astype(jnp.bfloat16),
        "b3": b3,
    }
    meta = {"out_dim": out}
    return kp, meta


# --------------------------------------------------------------------------
# Per-call wrapper: view-style reshapes + one pallas_call + final slice.
# --------------------------------------------------------------------------
@functools.partial(jax.jit, static_argnames=("out_dim",))
def striatum_forward(img, cort1, cort2, kp, out_dim):
    B = img.shape[0]
    img_flat = img.reshape(B, -1)                      # NCHW channels-first flatten
    c12 = jnp.concatenate([cort1.reshape(B, -1), cort2.reshape(B, -1)], axis=-1)

    d_img = img_flat.shape[1]
    d_c = c12.shape[1]
    hp2 = kp["b12"].shape[1]                           # 2 * padded hidden
    outp = kp["b3"].shape[1]                           # padded output lanes

    # Batch tiling: no wrapper-side padding (Pallas masks the ragged last
    # block).  Small batches run as one block; larger batches use >=2 grid
    # steps so ("parallel",) can shard across v7x's two TensorCores, capped at
    # MAX_TILE_B rows per step.
    if B <= SPLIT_THRESHOLD_B:
        tile_b = B
    else:
        tile_b = min(MAX_TILE_B, _round_up(pl.cdiv(B, 2), 8))
    grid = (pl.cdiv(B, tile_b),)

    act_bytes = img_flat.dtype.itemsize                # 2 if producer emits bf16
    weight_bytes = sum(int(v.size) * v.dtype.itemsize for v in kp.values())
    # Double-buffered streamed activations/output + weights (budget 2x for the
    # resident weights to be safe), plus margin.  Explicit so larger tiles are
    # legal under v5e's small scoped-VMEM default.
    vmem_needed = (2 * tile_b * (d_img + d_c) * act_bytes
                   + 2 * weight_bytes
                   + 2 * tile_b * outp * 2)
    vmem_limit = min(100 * 1024 * 1024, int(vmem_needed * 3 // 2) + (2 << 20))

    rows = grid[0] * tile_b
    flops = 2 * rows * (d_img * hp2 + d_c * hp2 + hp2 * outp)
    bytes_accessed = (rows * (d_img + d_c) * act_bytes    # activations in
                      + weight_bytes                       # weights/biases
                      + rows * outp * 2)                   # bf16 logits out

    def act_spec(feat):
        return pl.BlockSpec((tile_b, feat), lambda i: (i, 0))

    def resident_spec(r, c):
        # Same block index every step -> stays VMEM-resident across the grid.
        return pl.BlockSpec((r, c), lambda i: (0, 0))

    logits_pad = pl.pallas_call(
        striatum_kernel,
        out_shape=jax.ShapeDtypeStruct((B, outp), jnp.bfloat16),
        grid=grid,
        in_specs=[
            act_spec(d_img), act_spec(d_c),
            resident_spec(d_img, hp2), resident_spec(d_c, hp2),
            resident_spec(1, hp2),
            resident_spec(hp2, outp), resident_spec(1, outp),
        ],
        out_specs=act_spec(outp),
        compiler_params=pltpu.CompilerParams(
            dimension_semantics=("parallel",),
            vmem_limit_bytes=vmem_limit),
        cost_estimate=pl.CostEstimate(
            flops=flops, transcendentals=0, bytes_accessed=bytes_accessed),
    )(img_flat, c12, kp["w_img"], kp["w_c"], kp["b12"], kp["w3"], kp["b3"])

    # Drop the zero-padded logit lanes (fold into the consumer in real use).
    return logits_pad[:, :out_dim]


def reference_forward(img, cort1, cort2, params):
    """Pure-JAX f32 reference mirroring the PyTorch forward exactly."""
    B = img.shape[0]
    img_flat = img.reshape(B, -1)
    x1 = jnp.concatenate([img_flat, cort1.reshape(B, -1)], axis=-1)
    x2 = jnp.concatenate([img_flat, cort2.reshape(B, -1)], axis=-1)
    h1 = x1 @ params["w1"].T + params["b1"]
    h2 = x2 @ params["w2"].T + params["b2"]
    h = jnp.concatenate([h1, h2], axis=-1)
    return h @ params["w3"].T + params["b3"]


# TODO(synk): the PyTorch module's Adam-based `update()` (cross-entropy training
# step / optimizer state) is out of scope for this forward-pass kernel.

if __name__ == "__main__":
    batch = 2
    img_size = 16
    in_channels = 4
    cort1_dim = 32
    cort2_dim = 32
    output = 10
    h_size = 116

    key = jax.random.PRNGKey(0)
    k_img, k_c1, k_c2, k_params = jax.random.split(key, 4)

    # "Producer emits bf16": activations arrive bf16, halving the dominant img
    # HBM stream; the reference below uses the same bf16 values upcast to f32.
    img = jax.random.normal(k_img, (batch, in_channels, img_size, img_size),
                            dtype=jnp.float32).astype(jnp.bfloat16)
    cort1 = jax.random.normal(k_c1, (batch, cort1_dim),
                              dtype=jnp.float32).astype(jnp.bfloat16)
    cort2 = jax.random.normal(k_c2, (batch, cort2_dim),
                              dtype=jnp.float32).astype(jnp.bfloat16)

    params = init_params(k_params, img_size, in_channels,
                         cort1_dim, cort2_dim, output, h_size)
    img_feat = img_size * img_size * in_channels
    kp, meta = prepare_kernel_params(params, img_feat, cort1_dim, cort2_dim)

    logits = striatum_forward(img, cort1, cort2, kp, meta["out_dim"])
    logits = jax.block_until_ready(logits)

    ref = reference_forward(img.astype(jnp.float32), cort1.astype(jnp.float32),
                            cort2.astype(jnp.float32), params)
    assert logits.shape == (batch, output)
    # bf16 weights/activations/output with f32 accumulation => loosened tol
    # (intentional accuracy trade-off; the fusion/padding itself is exact).
    err = float(jnp.max(jnp.abs(logits.astype(jnp.float32) - ref)))
    assert err < 5e-2, err

    print("KERNEL_OK")
</pallas_src>

<mosaic_0001>
module attributes {stable_mosaic.version = 11 : i64} {
  func.func @striatum_kernel(%arg0: i32, %arg1: memref<2x1024xbf16, #tpu.memory_space<vmem>>, %arg2: memref<2x64xbf16, #tpu.memory_space<vmem>>, %arg3: memref<1024x256xbf16, #tpu.memory_space<vmem>>, %arg4: memref<64x256xbf16, #tpu.memory_space<vmem>>, %arg5: memref<1x256xf32, #tpu.memory_space<vmem>>, %arg6: memref<256x128xbf16, #tpu.memory_space<vmem>>, %arg7: memref<1x128xf32, #tpu.memory_space<vmem>>, %arg8: memref<2x128xbf16, #tpu.memory_space<vmem>>) attributes {dimension_semantics = [#tpu.dimension_semantics<parallel>], iteration_bounds = array<i64: 1>, scalar_prefetch = 0 : i64, scratch_operands = 0 : i64, tpu.core_type = #tpu.core_type<tc>, window_params = [{transform_indices = @transform_0, window_bounds = array<i64: 2, 1024>}, {transform_indices = @transform_1, window_bounds = array<i64: 2, 64>}, {pipeline_mode = #tpu.pipeline_mode<synchronous>, transform_indices = @transform_2, window_bounds = array<i64: 1024, 256>}, {pipeline_mode = #tpu.pipeline_mode<synchronous>, transform_indices = @transform_3, window_bounds = array<i64: 64, 256>}, {pipeline_mode = #tpu.pipeline_mode<synchronous>, transform_indices = @transform_4, window_bounds = array<i64: 1, 256>}, {pipeline_mode = #tpu.pipeline_mode<synchronous>, transform_indices = @transform_5, window_bounds = array<i64: 256, 128>}, {pipeline_mode = #tpu.pipeline_mode<synchronous>, transform_indices = @transform_6, window_bounds = array<i64: 1, 128>}, {transform_indices = @transform_7, window_bounds = array<i64: 2, 128>}]} {
    %c0 = arith.constant 0 : index
    %c0_0 = arith.constant 0 : index
    %0 = vector.load %arg1[%c0, %c0_0] : memref<2x1024xbf16, #tpu.memory_space<vmem>>, vector<2x1024xbf16>
    %c0_1 = arith.constant 0 : index
    %c0_2 = arith.constant 0 : index
    %1 = vector.load %arg2[%c0_1, %c0_2] : memref<2x64xbf16, #tpu.memory_space<vmem>>, vector<2x64xbf16>
    %c0_3 = arith.constant 0 : index
    %c0_4 = arith.constant 0 : index
    %2 = vector.load %arg3[%c0_3, %c0_4] : memref<1024x256xbf16, #tpu.memory_space<vmem>>, vector<1024x256xbf16>
    %cst = arith.constant dense<0.000000e+00> : vector<2x256xf32>
    %3 = tpu.matmul %0, %2, %cst {dimension_numbers = #tpu.dot_dimension_numbers<[1], [0], [0], [1], [0, 0, 1, 1], [], []>} : vector<2x1024xbf16>, vector<1024x256xbf16>, vector<2x256xf32> -> vector<2x256xf32>
    %c0_5 = arith.constant 0 : index
    %c0_6 = arith.constant 0 : index
    %4 = vector.load %arg4[%c0_5, %c0_6] : memref<64x256xbf16, #tpu.memory_space<vmem>>, vector<64x256xbf16>
    %cst_7 = arith.constant dense<0.000000e+00> : vector<2x256xf32>
    %5 = tpu.matmul %1, %4, %cst_7 {dimension_numbers = #tpu.dot_dimension_numbers<[1], [0], [0], [1], [0, 0, 1, 1], [], []>} : vector<2x64xbf16>, vector<64x256xbf16>, vector<2x256xf32> -> vector<2x256xf32>
    %6 = arith.addf %3, %5 : vector<2x256xf32>
    %c0_8 = arith.constant 0 : index
    %c0_9 = arith.constant 0 : index
    %7 = vector.load %arg5[%c0_8, %c0_9] : memref<1x256xf32, #tpu.memory_space<vmem>>, vector<1x256xf32>
    %8 = vector.broadcast %7 : vector<1x256xf32> to vector<2x256xf32>
    %9 = arith.addf %6, %8 : vector<2x256xf32>
    %10 = arith.truncf %9 : vector<2x256xf32> to vector<2x256xbf16>
    %c0_10 = arith.constant 0 : index
    %c0_11 = arith.constant 0 : index
    %11 = vector.load %arg6[%c0_10, %c0_11] : memref<256x128xbf16, #tpu.memory_space<vmem>>, vector<256x128xbf16>
    %cst_12 = arith.constant dense<0.000000e+00> : vector<2x128xf32>
    %12 = tpu.matmul %10, %11, %cst_12 {dimension_numbers = #tpu.dot_dimension_numbers<[1], [0], [0], [1], [0, 0, 1, 1], [], []>} : vector<2x256xbf16>, vector<256x128xbf16>, vector<2x128xf32> -> vector<2x128xf32>
    %c0_13 = arith.constant 0 : index
    %c0_14 = arith.constant 0 : index
    %13 = vector.load %arg7[%c0_13, %c0_14] : memref<1x128xf32, #tpu.memory_space<vmem>>, vector<1x128xf32>
    %14 = vector.broadcast %13 : vector<1x128xf32> to vector<2x128xf32>
    %15 = arith.addf %12, %14 : vector<2x128xf32>
    %16 = arith.truncf %15 : vector<2x128xf32> to vector<2x128xbf16>
    %c0_15 = arith.constant 0 : index
    %c0_16 = arith.constant 0 : index
    %17 = vector.load %arg8[%c0_15, %c0_16] : memref<2x128xbf16, #tpu.memory_space<vmem>>, vector<2x128xbf16>
    tpu.vector_store %arg8[%c0_15, %c0_16], %16 {strides = array<i32>} : memref<2x128xbf16, #tpu.memory_space<vmem>>, vector<2x128xbf16>,
    return
  }
  func.func @transform_0(%arg0: i32) -> (i32, i32) {
    %c0_i32 = arith.constant 0 : i32
    %c0_i32_0 = arith.constant 0 : i32
    return %arg0, %c0_i32 : i32, i32
  }
  func.func @transform_1(%arg0: i32) -> (i32, i32) {
    %c0_i32 = arith.constant 0 : i32
    %c0_i32_0 = arith.constant 0 : i32
    return %arg0, %c0_i32 : i32, i32
  }
  func.func @transform_2(%arg0: i32) -> (i32, i32) {
    %c0_i32 = arith.constant 0 : i32
    %c0_i32_0 = arith.constant 0 : i32
    %c0_i32_1 = arith.constant 0 : i32
    return %c0_i32, %c0_i32_0 : i32, i32
  }
  func.func @transform_3(%arg0: i32) -> (i32, i32) {
    %c0_i32 = arith.constant 0 : i32
    %c0_i32_0 = arith.constant 0 : i32
    %c0_i32_1 = arith.constant 0 : i32
    return %c0_i32, %c0_i32_0 : i32, i32
  }
  func.func @transform_4(%arg0: i32) -> (i32, i32) {
    %c0_i32 = arith.constant 0 : i32
    %c0_i32_0 = arith.constant 0 : i32
    %c0_i32_1 = arith.constant 0 : i32
    return %c0_i32, %c0_i32_0 : i32, i32
  }
  func.func @transform_5(%arg0: i32) -> (i32, i32) {
    %c0_i32 = arith.constant 0 : i32
    %c0_i32_0 = arith.constant 0 : i32
    %c0_i32_1 = arith.constant 0 : i32
    return %c0_i32, %c0_i32_0 : i32, i32
  }
  func.func @transform_6(%arg0: i32) -> (i32, i32) {
    %c0_i32 = arith.constant 0 : i32
    %c0_i32_0 = arith.constant 0 : i32
    %c0_i32_1 = arith.constant 0 : i32
    return %c0_i32, %c0_i32_0 : i32, i32
  }
  func.func @transform_7(%arg0: i32) -> (i32, i32) {
    %c0_i32 = arith.constant 0 : i32
    %c0_i32_0 = arith.constant 0 : i32
    return %arg0, %c0_i32 : i32, i32
  }
}

</mosaic_0001>

<llo_original>
// kernel: striatum_forward.1
$region0: #{striatum_forward.1}
  #allocation0 [shape = 'u32[]', space=smem, size = 0x4, offset = 0x4, fixed_abs, tag = 'smem constant byte address 0x4 - core index']
  #allocation1 [shape = 'u32[144,128]{1,0:T(1,128)}', space=vmem, size = 0x12000, scoped, tag = 'internal scratch']
  %s0 = inlined_call_operand.vmem [shape: bf16[2,1024], index: 0, kind: input, shape index: {}]
  %s1 = inlined_call_operand.vmem [shape: bf16[2,64], index: 1, kind: input, shape index: {}]
  %s2 = inlined_call_operand.hbm [shape: bf16[1024,256], index: 2, kind: input, shape index: {}]
  %s3 = inlined_call_operand.vmem [shape: bf16[64,256], index: 3, kind: input, shape index: {}]
  %s4 = inlined_call_operand.vmem [shape: f32[1,256], index: 4, kind: input, shape index: {}]
  %s5 = inlined_call_operand.hbm [shape: bf16[256,128], index: 5, kind: input, shape index: {}]
  %s6 = inlined_call_operand.vmem [shape: f32[1,128], index: 6, kind: input, shape index: {}]
  %s7 = inlined_call_operand.hbm [shape: bf16[2,128], index: 7, kind: output, shape index: {}]
  %s8 = sld [smem:[#allocation0]]
  $region46: #{striatum_forward.1} parent=0
    _
  %s10 = ssub.s32 1, %s8
  %s11 = scalar_select 0, %s10, %s8
  $region1: #{striatum_forward.1} parent=0
    #allocation2 [shape = 'u8[524288]{0}', space=vmem, size = 0x80000, scoped, tag = 'input window, operand 2, single buffered']
    #allocation3 [shape = 's32[1]{0}', space=sflag, size = 0x4, scoped, tag = 'scoped memory for striatum_forward.1']
    #allocation4 [shape = 's32[1]{0}', space=sflag, size = 0x4, scoped, tag = 'scoped memory for striatum_forward.1']
    #allocation5 [shape = 'u8[65536]{0}', space=vmem, size = 0x10000, scoped, tag = 'input window, operand 5, single buffered']
    #allocation6 [shape = 's32[1]{0}', space=sflag, size = 0x4, scoped, tag = 'scoped memory for striatum_forward.1']
    #allocation7 [shape = 'u8[512]{0}', space=vmem, size = 0x400, scoped, tag = 'output window, operand 0, single buffered']
    %12 = vsyncpa [#allocation3], 0
    %13 = vsyncpa [#allocation6], 0
    %14 = vsyncpa [#allocation4], 0
    // Predicated region
    $region2: #{striatum_forward.1} parent=1 // pred_check
      _
    $region3: #{striatum_forward.1} parent=1 // pred_check_branch
      %16 = sbr.rel (0) target = $region5
    $region4: #{striatum_forward.1} parent=1 // pred_region
      _
    $region5: #{striatum_forward.1} parent=1 // pred_fallthru
      _
    // Predicated region
    $region6: #{striatum_forward.1} parent=1 // pred_check
      _
    $region7: #{striatum_forward.1} parent=1 // pred_check_branch
      %18 = sbr.rel (0) target = $region9
    $region8: #{striatum_forward.1} parent=1 // pred_region
      _
    $region9: #{striatum_forward.1} parent=1 // pred_fallthru
      _
    // Predicated region
    $region10: #{striatum_forward.1} parent=1 // pred_check
      _
    $region11: #{striatum_forward.1} parent=1 // pred_check_branch
      %20 = sbr.rel (0) target = $region13
    $region12: #{striatum_forward.1} parent=1 // pred_region
      %s22 = ssub.s32 16384, 16384
      %23 = vsyncadd [#allocation3], %s22
      %s24 = sshll.u32 [#allocation2], 4
      %s25 = int_to_ptr.vmem [resolvable:$true] %s24
      %30 = dma.hbm_to_vmem [thread:$0]  %s2, 16384, %s25, [#allocation3], 128, 128, 8
    $region13: #{striatum_forward.1} parent=1 // pred_fallthru
      _
    // Predicated region
    $region14: #{striatum_forward.1} parent=1 // pred_check
      _
    $region15: #{striatum_forward.1} parent=1 // pred_check_branch
      %32 = sbr.rel (0) target = $region17
    $region16: #{striatum_forward.1} parent=1 // pred_region
      _
    $region17: #{striatum_forward.1} parent=1 // pred_fallthru
      _
    // Predicated region
    $region18: #{striatum_forward.1} parent=1 // pred_check
      _
    $region19: #{striatum_forward.1} parent=1 // pred_check_branch
      %34 = sbr.rel (0) target = $region21
    $region20: #{striatum_forward.1} parent=1 // pred_region
      _
    $region21: #{striatum_forward.1} parent=1 // pred_fallthru
      _
    // Predicated region
    $region22: #{striatum_forward.1} parent=1 // pred_check
      _
    $region23: #{striatum_forward.1} parent=1 // pred_check_branch
      %36 = sbr.rel (0) target = $region25
    $region24: #{striatum_forward.1} parent=1 // pred_region
      %s38 = ssub.s32 2048, 2048
      %39 = vsyncadd [#allocation6], %s38
      %s40 = sshll.u32 [#allocation5], 4
      %s41 = int_to_ptr.vmem [resolvable:$true] %s40
      %46 = dma.hbm_to_vmem [thread:$0]  %s5, 2048, %s41, [#allocation6], 64, 64, 4
    $region25: #{striatum_forward.1} parent=1 // pred_fallthru
      _
    // Predicated region
    $region26: #{striatum_forward.1} parent=1 // pred_check
      _
    $region27: #{striatum_forward.1} parent=1 // pred_check_branch
      %48 = sbr.rel (0) target = $region29
    $region28: #{striatum_forward.1} parent=1 // pred_region
      _
    $region29: #{striatum_forward.1} parent=1 // pred_fallthru
      _
    // Predicated region
    $region30: #{striatum_forward.1} parent=1 // pred_check
      _
    $region31: #{striatum_forward.1} parent=1 // pred_check_branch
      %50 = sbr.rel (0) target = $region33
    $region32: #{striatum_forward.1} parent=1 // pred_region
      %51 = dma.done [#allocation3], 16384
    $region33: #{striatum_forward.1} parent=1 // pred_fallthru
      _
    // Predicated region
    $region34: #{striatum_forward.1} parent=1 // pred_check
      _
    $region35: #{striatum_forward.1} parent=1 // pred_check_branch
      %53 = sbr.rel (0) target = $region37
    $region36: #{striatum_forward.1} parent=1 // pred_region
      %54 = dma.done [#allocation6], 2048
    $region37: #{striatum_forward.1} parent=1 // pred_fallthru
      _
    %v56 = vld [vmem:[%s0] sm:$0xff]
    %v57 = vld [vmem:[%s1] sm:$0x1]
    %v58 = vld [vmem:[#allocation2] sm:$0xff]
    %v59 = vld [vmem:[#allocation2 + $0x8] sm:$0xff]
    %v60 = vld [vmem:[#allocation2 + $0x10] sm:$0xff]
    %v61 = vld [vmem:[#allocation2 + $0x18] sm:$0xff]
    %v62 = vld [vmem:[#allocation2 + $0x20] sm:$0xff]
    %v63 = vld [vmem:[#allocation2 + $0x28] sm:$0xff]
    %v64 = vld [vmem:[#allocation2 + $0x30] sm:$0xff]
    %v65 = vld [vmem:[#allocation2 + $0x38] sm:$0xff]
    %v66 = vld [vmem:[#allocation2 + $0x40] sm:$0xff]
    %v67 = vld [vmem:[#allocation2 + $0x48] sm:$0xff]
    %v68 = vld [vmem:[#allocation2 + $0x50] sm:$0xff]
    %v69 = vld [vmem:[#allocation2 + $0x58] sm:$0xff]
    %v70 = vld [vmem:[#allocation2 + $0x60] sm:$0xff]
    %v71 = vld [vmem:[#allocation2 + $0x68] sm:$0xff]
    %v72 = vld [vmem:[#allocation2 + $0x70] sm:$0xff]
    %v73 = vld [vmem:[#allocation2 + $0x78] sm:$0xff]
    %v74 = vld [vmem:[#allocation2 + $0x80] sm:$0xff]
    %v75 = vld [vmem:[#allocation2 + $0x88] sm:$0xff]
    %v76 = vld [vmem:[#allocation2 + $0x90] sm:$0xff]
    %v77 = vld [vmem:[#allocation2 + $0x98] sm:$0xff]
    %v78 = vld [vmem:[#allocation2 + $0xa0] sm:$0xff]
    %v79 = vld [vmem:[#allocation2 + $0xa8] sm:$0xff]
    %v80 = vld [vmem:[#allocation2 + $0xb0] sm:$0xff]
    %v81 = vld [vmem:[#allocation2 + $0xb8] sm:$0xff]
    %v82 = vld [vmem:[#allocation2 + $0xc0] sm:$0xff]
    %v83 = vld [vmem:[#allocation2 + $0xc8] sm:$0xff]
    %v84 = vld [vmem:[#allocation2 + $0xd0] sm:$0xff]
    %v85 = vld [vmem:[#allocation2 + $0xd8] sm:$0xff]
    %v86 = vld [vmem:[#allocation2 + $0xe0] sm:$0xff]
    %v87 = vld [vmem:[#allocation2 + $0xe8] sm:$0xff]
    %v88 = vld [vmem:[#allocation2 + $0xf0] sm:$0xff]
    %v89 = vld [vmem:[#allocation2 + $0xf8] sm:$0xff]
    %v90 = vld [vmem:[#allocation2 + $0x100] sm:$0xff]
    %v91 = vld [vmem:[#allocation2 + $0x108] sm:$0xff]
    %v92 = vld [vmem:[#allocation2 + $0x110] sm:$0xff]
    %v93 = vld [vmem:[#allocation2 + $0x118] sm:$0xff]
    %v94 = vld [vmem:[#allocation2 + $0x120] sm:$0xff]
    %v95 = vld [vmem:[#allocation2 + $0x128] sm:$0xff]
    %v96 = vld [vmem:[#allocation2 + $0x130] sm:$0xff]
    %v97 = vld [vmem:[#allocation2 + $0x138] sm:$0xff]
    %v98 = vld [vmem:[#allocation2 + $0x140] sm:$0xff]
    %v99 = vld [vmem:[#allocation2 + $0x148] sm:$0xff]
    %v100 = vld [vmem:[#allocation2 + $0x150] sm:$0xff]
    %v101 = vld [vmem:[#allocation2 + $0x158] sm:$0xff]
    %v102 = vld [vmem:[#allocation2 + $0x160] sm:$0xff]
    %v103 = vld [vmem:[#allocation2 + $0x168] sm:$0xff]
    %v104 = vld [vmem:[#allocation2 + $0x170] sm:$0xff]
    %v105 = vld [vmem:[#allocation2 + $0x178] sm:$0xff]
    %v106 = vld [vmem:[#allocation2 + $0x180] sm:$0xff]
    %v107 = vld [vmem:[#allocation2 + $0x188] sm:$0xff]
    %v108 = vld [vmem:[#allocation2 + $0x190] sm:$0xff]
    %v109 = vld [vmem:[#allocation2 + $0x198] sm:$0xff]
    %v110 = vld [vmem:[#allocation2 + $0x1a0] sm:$0xff]
    %v111 = vld [vmem:[#allocation2 + $0x1a8] sm:$0xff]
    %v112 = vld [vmem:[#allocation2 + $0x1b0] sm:$0xff]
    %v113 = vld [vmem:[#allocation2 + $0x1b8] sm:$0xff]
    %v114 = vld [vmem:[#allocation2 + $0x1c0] sm:$0xff]
    %v115 = vld [vmem:[#allocation2 + $0x1c8] sm:$0xff]
    %v116 = vld [vmem:[#allocation2 + $0x1d0] sm:$0xff]
    %v117 = vld [vmem:[#allocation2 + $0x1d8] sm:$0xff]
    %v118 = vld [vmem:[#allocation2 + $0x1e0] sm:$0xff]
    %v119 = vld [vmem:[#allocation2 + $0x1e8] sm:$0xff]
    %v120 = vld [vmem:[#allocation2 + $0x1f0] sm:$0xff]
    %v121 = vld [vmem:[#allocation2 + $0x1f8] sm:$0xff]
    %v122 = vld [vmem:[#allocation2 + $0x200] sm:$0xff]
    %v123 = vld [vmem:[#allocation2 + $0x208] sm:$0xff]
    %v124 = vld [vmem:[#allocation2 + $0x210] sm:$0xff]
    %v125 = vld [vmem:[#allocation2 + $0x218] sm:$0xff]
    %v126 = vld [vmem:[#allocation2 + $0x220] sm:$0xff]
    %v127 = vld [vmem:[#allocation2 + $0x228] sm:$0xff]
    %v128 = vld [vmem:[#allocation2 + $0x230] sm:$0xff]
    %v129 = vld [vmem:[#allocation2 + $0x238] sm:$0xff]
    %v130 = vld [vmem:[#allocation2 + $0x240] sm:$0xff]
    %v131 = vld [vmem:[#allocation2 + $0x248] sm:$0xff]
    %v132 = vld [vmem:[#allocation2 + $0x250] sm:$0xff]
    %v133 = vld [vmem:[#allocation2 + $0x258] sm:$0xff]
    %v134 = vld [vmem:[#allocation2 + $0x260] sm:$0xff]
    %v135 = vld [vmem:[#allocation2 + $0x268] sm:$0xff]
    %v136 = vld [vmem:[#allocation2 + $0x270] sm:$0xff]
    %v137 = vld [vmem:[#allocation2 + $0x278] sm:$0xff]
    %v138 = vld [vmem:[#allocation2 + $0x280] sm:$0xff]
    %v139 = vld [vmem:[#allocation2 + $0x288] sm:$0xff]
    %v140 = vld [vmem:[#allocation2 + $0x290] sm:$0xff]
    %v141 = vld [vmem:[#allocation2 + $0x298] sm:$0xff]
    %v142 = vld [vmem:[#allocation2 + $0x2a0] sm:$0xff]
    %v143 = vld [vmem:[#allocation2 + $0x2a8] sm:$0xff]
    %v144 = vld [vmem:[#allocation2 + $0x2b0] sm:$0xff]
    %v145 = vld [vmem:[#allocation2 + $0x2b8] sm:$0xff]
    %v146 = vld [vmem:[#allocation2 + $0x2c0] sm:$0xff]
    %v147 = vld [vmem:[#allocation2 + $0x2c8] sm:$0xff]
    %v148 = vld [vmem:[#allocation2 + $0x2d0] sm:$0xff]
    %v149 = vld [vmem:[#allocation2 + $0x2d8] sm:$0xff]
    %v150 = vld [vmem:[#allocation2 + $0x2e0] sm:$0xff]
    %v151 = vld [vmem:[#allocation2 + $0x2e8] sm:$0xff]
    %v152 = vld [vmem:[#allocation2 + $0x2f0] sm:$0xff]
    %v153 = vld [vmem:[#allocation2 + $0x2f8] sm:$0xff]
    %v154 = vld [vmem:[#allocation2 + $0x300] sm:$0xff]
    %v155 = vld [vmem:[#allocation2 + $0x308] sm:$0xff]
    %v156 = vld [vmem:[#allocation2 + $0x310] sm:$0xff]
    %v157 = vld [vmem:[#allocation2 + $0x318] sm:$0xff]
    %v158 = vld [vmem:[#allocation2 + $0x320] sm:$0xff]
    %v159 = vld [vmem:[#allocation2 + $0x328] sm:$0xff]
    %v160 = vld [vmem:[#allocation2 + $0x330] sm:$0xff]
    %v161 = vld [vmem:[#allocation2 + $0x338] sm:$0xff]
    %v162 = vld [vmem:[#allocation2 + $0x340] sm:$0xff]
    %v163 = vld [vmem:[#allocation2 + $0x348] sm:$0xff]
    %v164 = vld [vmem:[#allocation2 + $0x350] sm:$0xff]
    %v165 = vld [vmem:[#allocation2 + $0x358] sm:$0xff]
    %v166 = vld [vmem:[#allocation2 + $0x360] sm:$0xff]
    %v167 = vld [vmem:[#allocation2 + $0x368] sm:$0xff]
    %v168 = vld [vmem:[#allocation2 + $0x370] sm:$0xff]
    %v169 = vld [vmem:[#allocation2 + $0x378] sm:$0xff]
    %v170 = vld [vmem:[#allocation2 + $0x380] sm:$0xff]
    %v171 = vld [vmem:[#allocation2 + $0x388] sm:$0xff]
    %v172 = vld [vmem:[#allocation2 + $0x390] sm:$0xff]
    %v173 = vld [vmem:[#allocation2 + $0x398] sm:$0xff]
    %v174 = vld [vmem:[#allocation2 + $0x3a0] sm:$0xff]
    %v175 = vld [vmem:[#allocation2 + $0x3a8] sm:$0xff]
    %v176 = vld [vmem:[#allocation2 + $0x3b0] sm:$0xff]
    %v177 = vld [vmem:[#allocation2 + $0x3b8] sm:$0xff]
    %v178 = vld [vmem:[#allocation2 + $0x3c0] sm:$0xff]
    %v179 = vld [vmem:[#allocation2 + $0x3c8] sm:$0xff]
    %v180 = vld [vmem:[#allocation2 + $0x3d0] sm:$0xff]
    %v181 = vld [vmem:[#allocation2 + $0x3d8] sm:$0xff]
    %v182 = vld [vmem:[#allocation2 + $0x3e0] sm:$0xff]
    %v183 = vld [vmem:[#allocation2 + $0x3e8] sm:$0xff]
    %v184 = vld [vmem:[#allocation2 + $0x3f0] sm:$0xff]
    %v185 = vld [vmem:[#allocation2 + $0x3f8] sm:$0xff]
    %v186 = vld [vmem:[%s3] sm:$0xff]
    %v187 = vld [vmem:[%s3 + $0x8] sm:$0xff]
    %v188 = vld [vmem:[%s3 + $0x10] sm:$0xff]
    %v189 = vld [vmem:[%s3 + $0x18] sm:$0xff]
    %v190 = vld [vmem:[%s3 + $0x20] sm:$0xff]
    %v191 = vld [vmem:[%s3 + $0x28] sm:$0xff]
    %v192 = vld [vmem:[%s3 + $0x30] sm:$0xff]
    %v193 = vld [vmem:[%s3 + $0x38] sm:$0xff]
    %v202 = vunpack.c.l.b16 %v186
    %v203 = vunpack.c.h.b16 %v186
    %v204 = vunpack.c.l.b16 %v187
    %v205 = vunpack.c.h.b16 %v187
    %v206 = vunpack.c.l.b16 %v188
    %v207 = vunpack.c.h.b16 %v188
    %v208 = vunpack.c.l.b16 %v189
    %v209 = vunpack.c.h.b16 %v189
    %v210 = vunpack.c.l.b16 %v190
    %v211 = vunpack.c.h.b16 %v190
    %v212 = vunpack.c.l.b16 %v191
    %v213 = vunpack.c.h.b16 %v191
    %v214 = vunpack.c.l.b16 %v192
    %v215 = vunpack.c.h.b16 %v192
    %v216 = vunpack.c.l.b16 %v193
    %v217 = vunpack.c.h.b16 %v193
    %v218 = vpack.c.b16 %v204, %v202
    %v219 = vpack.c.b16 %v205, %v203
    %v220 = vpack.c.b16 %v208, %v206
    %v221 = vpack.c.b16 %v209, %v207
    %v222 = vpack.c.b16 %v212, %v210
    %v223 = vpack.c.b16 %v213, %v211
    %v224 = vpack.c.b16 %v216, %v214
    %v225 = vpack.c.b16 %v217, %v215
    %vm234 = vcmask 523264
    %v236 = vsel %vm234, %v57, 0
    %238 = vmatprep.subr.bf16.mxu0 %v219
    %239 = vmatpush1.bf16.msra.mxu0 %v218
    %240 = vmatprep.subr.bf16.mxu0 %v221
    %241 = vmatpush1.bf16.msra.mxu0 %v220
    %242 = vmatprep.subr.bf16.mxu0 %v223
    %243 = vmatpush1.bf16.msra.mxu0 %v222
    %244 = vmatprep.subr.bf16.mxu0 %v225
    %245 = vmatpush1.bf16.msra.mxu0 %v224
    %246 = vmatprep.subr.bf16.mxu0 0
    %247 = vmatpush1.bf16.msra.mxu0 0
    %248 = vmatprep.subr.bf16.mxu0 0
    %249 = vmatpush1.bf16.msra.mxu0 0
    %250 = vmatprep.subr.bf16.mxu0 0
    %251 = vmatpush1.bf16.msra.mxu0 0
    %252 = vmatprep.subr.bf16.mxu0 0
    %253 = vmatpush1.bf16.msra.mxu0 0
    %254 = vmatprep.subr.bf16.mxu0 0
    %255 = vmatpush1.bf16.msra.mxu0 0
    %256 = vmatprep.subr.bf16.mxu0 0
    %257 = vmatpush1.bf16.msra.mxu0 0
    %258 = vmatprep.subr.bf16.mxu0 0
    %259 = vmatpush1.bf16.msra.mxu0 0
    %260 = vmatprep.subr.bf16.mxu0 0
    %261 = vmatpush1.bf16.msra.mxu0 0
    %262 = vmatprep.subr.bf16.mxu0 0
    %263 = vmatpush1.bf16.msra.mxu0 0
    %264 = vmatprep.subr.bf16.mxu0 0
    %265 = vmatpush1.bf16.msra.mxu0 0
    %266 = vmatprep.subr.bf16.mxu0 0
    %267 = vmatpush1.bf16.msra.mxu0 0
    %268 = vmatprep.subr.bf16.mxu0 0
    %269 = vmatpush1.bf16.msra.mxu0 0
    %270 = vmatprep.mubr.bf16.mxu0 0
    %271 = vmatmul.mubr.bf16.gmra.mrb[0].mxu0 %v236
    %v272 = vpop.f32.mrb[0].mxu0
    %v273 = vadd.f32 0.0, %v272
    %v274 = vpop.f32.mrb[0].mxu0
    %v275 = vadd.f32 0.0, %v274
    %v276 = vpop.f32.mrb[0].mxu0
    %v277 = vpop.f32.mrb[0].mxu0
    %278 = vdwg.mxu0
    %v280 = vcombine.high %v56, %v56
    %v282 = vunpack.c.l.s4 1966171168
    %v283 = vunpack.c.0.s8 %v282
    %v284 = vlaneseq
    %v285 = vshrl.u32 %v284, 7
    %v286 = vsub.s32 %v283, %v285
    %v287 = vrot.slane %v56, %v286
    %v289 = vunpack.c.l.s4 1966171168
    %v290 = vunpack.c.0.s8 %v289
    %v291 = vlaneseq
    %v292 = vshrl.u32 %v291, 7
    %v293 = vsub.s32 %v290, %v292
    %v294 = vrot.slane %v280, %v293
    %v295 = vcombine.high %v287, %v287
    %v296 = vcombine.high %v294, %v294
    %v298 = vunpack.c.l.s4 1966171168
    %v299 = vunpack.c.0.s8 %v298
    %v300 = vlaneseq
    %v301 = vshrl.u32 %v300, 7
    %v302 = vsub.s32 %v299, %v301
    %v303 = vrot.slane %v287, %v302
    %v305 = vunpack.c.l.s4 1966171168
    %v306 = vunpack.c.0.s8 %v305
    %v307 = vlaneseq
    %v308 = vshrl.u32 %v307, 7
    %v309 = vsub.s32 %v306, %v308
    %v310 = vrot.slane %v294, %v309
    %v312 = vunpack.c.l.s4 1966171168
    %v313 = vunpack.c.0.s8 %v312
    %v314 = vlaneseq
    %v315 = vshrl.u32 %v314, 7
    %v316 = vsub.s32 %v313, %v315
    %v317 = vrot.slane %v295, %v316
    %v319 = vunpack.c.l.s4 1966171168
    %v320 = vunpack.c.0.s8 %v319
    %v321 = vlaneseq
    %v322 = vshrl.u32 %v321, 7
    %v323 = vsub.s32 %v320, %v322
    %v324 = vrot.slane %v296, %v323
    %v325 = vcombine.high %v303, %v303
    %v326 = vcombine.high %v310, %v310
    %v327 = vcombine.high %v317, %v317
    %v328 = vcombine.high %v324, %v324
    %v465 = vunpack.c.l.b16 %v58
    %v466 = vunpack.c.h.b16 %v58
    %v467 = vunpack.c.l.b16 %v59
    %v468 = vunpack.c.h.b16 %v59
    %v469 = vunpack.c.l.b16 %v60
    %v470 = vunpack.c.h.b16 %v60
    %v471 = vunpack.c.l.b16 %v61
    %v472 = vunpack.c.h.b16 %v61
    %v473 = vunpack.c.l.b16 %v62
    %v474 = vunpack.c.h.b16 %v62
    %v475 = vunpack.c.l.b16 %v63
    %v476 = vunpack.c.h.b16 %v63
    %v477 = vunpack.c.l.b16 %v64
    %v478 = vunpack.c.h.b16 %v64
    %v479 = vunpack.c.l.b16 %v65
    %v480 = vunpack.c.h.b16 %v65
    %v481 = vunpack.c.l.b16 %v66
    %v482 = vunpack.c.h.b16 %v66
    %v483 = vunpack.c.l.b16 %v67
    %v484 = vunpack.c.h.b16 %v67
    %v485 = vunpack.c.l.b16 %v68
    %v486 = vunpack.c.h.b16 %v68
    %v487 = vunpack.c.l.b16 %v69
    %v488 = vunpack.c.h.b16 %v69
    %v489 = vunpack.c.l.b16 %v70
    %v490 = vunpack.c.h.b16 %v70
    %v491 = vunpack.c.l.b16 %v71
    %v492 = vunpack.c.h.b16 %v71
    %v493 = vunpack.c.l.b16 %v72
    %v494 = vunpack.c.h.b16 %v72
    %v495 = vunpack.c.l.b16 %v73
    %v496 = vunpack.c.h.b16 %v73
    %v497 = vunpack.c.l.b16 %v74
    %v498 = vunpack.c.h.b16 %v74
    %v499 = vunpack.c.l.b16 %v75
    %v500 = vunpack.c.h.b16 %v75
    %v501 = vunpack.c.l.b16 %v76
    %v502 = vunpack.c.h.b16 %v76
    %v503 = vunpack.c.l.b16 %v77
    %v504 = vunpack.c.h.b16 %v77
    %v505 = vunpack.c.l.b16 %v78
    %v506 = vunpack.c.h.b16 %v78
    %v507 = vunpack.c.l.b16 %v79
    %v508 = vunpack.c.h.b16 %v79
    %v509 = vunpack.c.l.b16 %v80
    %v510 = vunpack.c.h.b16 %v80
    %v511 = vunpack.c.l.b16 %v81
    %v512 = vunpack.c.h.b16 %v81
    %v513 = vunpack.c.l.b16 %v82
    %v514 = vunpack.c.h.b16 %v82
    %v515 = vunpack.c.l.b16 %v83
    %v516 = vunpack.c.h.b16 %v83
    %v517 = vunpack.c.l.b16 %v84
    %v518 = vunpack.c.h.b16 %v84
    %v519 = vunpack.c.l.b16 %v85
    %v520 = vunpack.c.h.b16 %v85
    %v521 = vunpack.c.l.b16 %v86
    %v522 = vunpack.c.h.b16 %v86
    %v523 = vunpack.c.l.b16 %v87
    %v524 = vunpack.c.h.b16 %v87
    %v525 = vunpack.c.l.b16 %v88
    %v526 = vunpack.c.h.b16 %v88
    %v527 = vunpack.c.l.b16 %v89
    %v528 = vunpack.c.h.b16 %v89
    %v529 = vunpack.c.l.b16 %v90
    %v530 = vunpack.c.h.b16 %v90
    %v531 = vunpack.c.l.b16 %v91
    %v532 = vunpack.c.h.b16 %v91
    %v533 = vunpack.c.l.b16 %v92
    %v534 = vunpack.c.h.b16 %v92
    %v535 = vunpack.c.l.b16 %v93
    %v536 = vunpack.c.h.b16 %v93
    %v537 = vunpack.c.l.b16 %v94
    %v538 = vunpack.c.h.b16 %v94
    %v539 = vunpack.c.l.b16 %v95
    %v540 = vunpack.c.h.b16 %v95
    %v541 = vunpack.c.l.b16 %v96
    %v542 = vunpack.c.h.b16 %v96
    %v543 = vunpack.c.l.b16 %v97
    %v544 = vunpack.c.h.b16 %v97
    %v545 = vunpack.c.l.b16 %v98
    %v546 = vunpack.c.h.b16 %v98
    %v547 = vunpack.c.l.b16 %v99
    %v548 = vunpack.c.h.b16 %v99
    %v549 = vunpack.c.l.b16 %v100
    %v550 = vunpack.c.h.b16 %v100
    %v551 = vunpack.c.l.b16 %v101
    %v552 = vunpack.c.h.b16 %v101
    %v553 = vunpack.c.l.b16 %v102
    %v554 = vunpack.c.h.b16 %v102
    %v555 = vunpack.c.l.b16 %v103
    %v556 = vunpack.c.h.b16 %v103
    %v557 = vunpack.c.l.b16 %v104
    %v558 = vunpack.c.h.b16 %v104
    %v559 = vunpack.c.l.b16 %v105
    %v560 = vunpack.c.h.b16 %v105
    %v561 = vunpack.c.l.b16 %v106
    %v562 = vunpack.c.h.b16 %v106
    %v563 = vunpack.c.l.b16 %v107
    %v564 = vunpack.c.h.b16 %v107
    %v565 = vunpack.c.l.b16 %v108
    %v566 = vunpack.c.h.b16 %v108
    %v567 = vunpack.c.l.b16 %v109
    %v568 = vunpack.c.h.b16 %v109
    %v569 = vunpack.c.l.b16 %v110
    %v570 = vunpack.c.h.b16 %v110
    %v571 = vunpack.c.l.b16 %v111
    %v572 = vunpack.c.h.b16 %v111
    %v573 = vunpack.c.l.b16 %v112
    %v574 = vunpack.c.h.b16 %v112
    %v575 = vunpack.c.l.b16 %v113
    %v576 = vunpack.c.h.b16 %v113
    %v577 = vunpack.c.l.b16 %v114
    %v578 = vunpack.c.h.b16 %v114
    %v579 = vunpack.c.l.b16 %v115
    %v580 = vunpack.c.h.b16 %v115
    %v581 = vunpack.c.l.b16 %v116
    %v582 = vunpack.c.h.b16 %v116
    %v583 = vunpack.c.l.b16 %v117
    %v584 = vunpack.c.h.b16 %v117
    %v585 = vunpack.c.l.b16 %v118
    %v586 = vunpack.c.h.b16 %v118
    %v587 = vunpack.c.l.b16 %v119
    %v588 = vunpack.c.h.b16 %v119
    %v589 = vunpack.c.l.b16 %v120
    %v590 = vunpack.c.h.b16 %v120
    %v591 = vunpack.c.l.b16 %v121
    %v592 = vunpack.c.h.b16 %v121
    %v593 = vunpack.c.l.b16 %v122
    %v594 = vunpack.c.h.b16 %v122
    %v595 = vunpack.c.l.b16 %v123
    %v596 = vunpack.c.h.b16 %v123
    %v597 = vunpack.c.l.b16 %v124
    %v598 = vunpack.c.h.b16 %v124
    %v599 = vunpack.c.l.b16 %v125
    %v600 = vunpack.c.h.b16 %v125
    %v601 = vunpack.c.l.b16 %v126
    %v602 = vunpack.c.h.b16 %v126
    %v603 = vunpack.c.l.b16 %v127
    %v604 = vunpack.c.h.b16 %v127
    %v605 = vunpack.c.l.b16 %v128
    %v606 = vunpack.c.h.b16 %v128
    %v607 = vunpack.c.l.b16 %v129
    %v608 = vunpack.c.h.b16 %v129
    %v609 = vunpack.c.l.b16 %v130
    %v610 = vunpack.c.h.b16 %v130
    %v611 = vunpack.c.l.b16 %v131
    %v612 = vunpack.c.h.b16 %v131
    %v613 = vunpack.c.l.b16 %v132
    %v614 = vunpack.c.h.b16 %v132
    %v615 = vunpack.c.l.b16 %v133
    %v616 = vunpack.c.h.b16 %v133
    %v617 = vunpack.c.l.b16 %v134
    %v618 = vunpack.c.h.b16 %v134
    %v619 = vunpack.c.l.b16 %v135
    %v620 = vunpack.c.h.b16 %v135
    %v621 = vunpack.c.l.b16 %v136
    %v622 = vunpack.c.h.b16 %v136
    %v623 = vunpack.c.l.b16 %v137
    %v624 = vunpack.c.h.b16 %v137
    %v625 = vunpack.c.l.b16 %v138
    %v626 = vunpack.c.h.b16 %v138
    %v627 = vunpack.c.l.b16 %v139
    %v628 = vunpack.c.h.b16 %v139
    %v629 = vunpack.c.l.b16 %v140
    %v630 = vunpack.c.h.b16 %v140
    %v631 = vunpack.c.l.b16 %v141
    %v632 = vunpack.c.h.b16 %v141
    %v633 = vunpack.c.l.b16 %v142
    %v634 = vunpack.c.h.b16 %v142
    %v635 = vunpack.c.l.b16 %v143
    %v636 = vunpack.c.h.b16 %v143
    %v637 = vunpack.c.l.b16 %v144
    %v638 = vunpack.c.h.b16 %v144
    %v639 = vunpack.c.l.b16 %v145
    %v640 = vunpack.c.h.b16 %v145
    %v641 = vunpack.c.l.b16 %v146
    %v642 = vunpack.c.h.b16 %v146
    %v643 = vunpack.c.l.b16 %v147
    %v644 = vunpack.c.h.b16 %v147
    %v645 = vunpack.c.l.b16 %v148
    %v646 = vunpack.c.h.b16 %v148
    %v647 = vunpack.c.l.b16 %v149
    %v648 = vunpack.c.h.b16 %v149
    %v649 = vunpack.c.l.b16 %v150
    %v650 = vunpack.c.h.b16 %v150
    %v651 = vunpack.c.l.b16 %v151
    %v652 = vunpack.c.h.b16 %v151
    %v653 = vunpack.c.l.b16 %v152
    %v654 = vunpack.c.h.b16 %v152
    %v655 = vunpack.c.l.b16 %v153
    %v656 = vunpack.c.h.b16 %v153
    %v657 = vunpack.c.l.b16 %v154
    %v658 = vunpack.c.h.b16 %v154
    %v659 = vunpack.c.l.b16 %v155
    %v660 = vunpack.c.h.b16 %v155
    %v661 = vunpack.c.l.b16 %v156
    %v662 = vunpack.c.h.b16 %v156
    %v663 = vunpack.c.l.b16 %v157
    %v664 = vunpack.c.h.b16 %v157
    %v665 = vunpack.c.l.b16 %v158
    %v666 = vunpack.c.h.b16 %v158
    %v667 = vunpack.c.l.b16 %v159
    %v668 = vunpack.c.h.b16 %v159
    %v669 = vunpack.c.l.b16 %v160
    %v670 = vunpack.c.h.b16 %v160
    %v671 = vunpack.c.l.b16 %v161
    %v672 = vunpack.c.h.b16 %v161
    %v673 = vunpack.c.l.b16 %v162
    %v674 = vunpack.c.h.b16 %v162
    %v675 = vunpack.c.l.b16 %v163
    %v676 = vunpack.c.h.b16 %v163
    %v677 = vunpack.c.l.b16 %v164
    %v678 = vunpack.c.h.b16 %v164
    %v679 = vunpack.c.l.b16 %v165
    %v680 = vunpack.c.h.b16 %v165
    %v681 = vunpack.c.l.b16 %v166
    %v682 = vunpack.c.h.b16 %v166
    %v683 = vunpack.c.l.b16 %v167
    %v684 = vunpack.c.h.b16 %v167
    %v685 = vunpack.c.l.b16 %v168
    %v686 = vunpack.c.h.b16 %v168
    %v687 = vunpack.c.l.b16 %v169
    %v688 = vunpack.c.h.b16 %v169
    %v689 = vunpack.c.l.b16 %v170
    %v690 = vunpack.c.h.b16 %v170
    %v691 = vunpack.c.l.b16 %v171
    %v692 = vunpack.c.h.b16 %v171
    %v693 = vunpack.c.l.b16 %v172
    %v694 = vunpack.c.h.b16 %v172
    %v695 = vunpack.c.l.b16 %v173
    %v696 = vunpack.c.h.b16 %v173
    %v697 = vunpack.c.l.b16 %v174
    %v698 = vunpack.c.h.b16 %v174
    %v699 = vunpack.c.l.b16 %v175
    %v700 = vunpack.c.h.b16 %v175
    %v701 = vunpack.c.l.b16 %v176
    %v702 = vunpack.c.h.b16 %v176
    %v703 = vunpack.c.l.b16 %v177
    %v704 = vunpack.c.h.b16 %v177
    %v705 = vunpack.c.l.b16 %v178
    %v706 = vunpack.c.h.b16 %v178
    %v707 = vunpack.c.l.b16 %v179
    %v708 = vunpack.c.h.b16 %v179
    %v709 = vunpack.c.l.b16 %v180
    %v710 = vunpack.c.h.b16 %v180
    %v711 = vunpack.c.l.b16 %v181
    %v712 = vunpack.c.h.b16 %v181
    %v713 = vunpack.c.l.b16 %v182
    %v714 = vunpack.c.h.b16 %v182
    %v715 = vunpack.c.l.b16 %v183
    %v716 = vunpack.c.h.b16 %v183
    %v717 = vunpack.c.l.b16 %v184
    %v718 = vunpack.c.h.b16 %v184
    %v719 = vunpack.c.l.b16 %v185
    %v720 = vunpack.c.h.b16 %v185
    %v721 = vpack.c.b16 %v467, %v465
    %v722 = vpack.c.b16 %v468, %v466
    %v723 = vpack.c.b16 %v471, %v469
    %v724 = vpack.c.b16 %v472, %v470
    %v725 = vpack.c.b16 %v475, %v473
    %v726 = vpack.c.b16 %v476, %v474
    %v727 = vpack.c.b16 %v479, %v477
    %v728 = vpack.c.b16 %v480, %v478
    %v729 = vpack.c.b16 %v483, %v481
    %v730 = vpack.c.b16 %v484, %v482
    %v731 = vpack.c.b16 %v487, %v485
    %v732 = vpack.c.b16 %v488, %v486
    %v733 = vpack.c.b16 %v491, %v489
    %v734 = vpack.c.b16 %v492, %v490
    %v735 = vpack.c.b16 %v495, %v493
    %v736 = vpack.c.b16 %v496, %v494
    %v737 = vpack.c.b16 %v499, %v497
    %v738 = vpack.c.b16 %v500, %v498
    %v739 = vpack.c.b16 %v503, %v501
    %v740 = vpack.c.b16 %v504, %v502
    %v741 = vpack.c.b16 %v507, %v505
    %v742 = vpack.c.b16 %v508, %v506
    %v743 = vpack.c.b16 %v511, %v509
    %v744 = vpack.c.b16 %v512, %v510
    %v745 = vpack.c.b16 %v515, %v513
    %v746 = vpack.c.b16 %v516, %v514
    %v747 = vpack.c.b16 %v519, %v517
    %v748 = vpack.c.b16 %v520, %v518
    %v749 = vpack.c.b16 %v523, %v521
    %v750 = vpack.c.b16 %v524, %v522
    %v751 = vpack.c.b16 %v527, %v525
    %v752 = vpack.c.b16 %v528, %v526
    %v753 = vpack.c.b16 %v531, %v529
    %v754 = vpack.c.b16 %v532, %v530
    %v755 = vpack.c.b16 %v535, %v533
    %v756 = vpack.c.b16 %v536, %v534
    %v757 = vpack.c.b16 %v539, %v537
    %v758 = vpack.c.b16 %v540, %v538
    %v759 = vpack.c.b16 %v543, %v541
    %v760 = vpack.c.b16 %v544, %v542
    %v761 = vpack.c.b16 %v547, %v545
    %v762 = vpack.c.b16 %v548, %v546
    %v763 = vpack.c.b16 %v551, %v549
    %v764 = vpack.c.b16 %v552, %v550
    %v765 = vpack.c.b16 %v555, %v553
    %v766 = vpack.c.b16 %v556, %v554
    %v767 = vpack.c.b16 %v559, %v557
    %v768 = vpack.c.b16 %v560, %v558
    %v769 = vpack.c.b16 %v563, %v561
    %v770 = vpack.c.b16 %v564, %v562
    %v771 = vpack.c.b16 %v567, %v565
    %v772 = vpack.c.b16 %v568, %v566
    %v773 = vpack.c.b16 %v571, %v569
    %v774 = vpack.c.b16 %v572, %v570
    %v775 = vpack.c.b16 %v575, %v573
    %v776 = vpack.c.b16 %v576, %v574
    %v777 = vpack.c.b16 %v579, %v577
    %v778 = vpack.c.b16 %v580, %v578
    %v779 = vpack.c.b16 %v583, %v581
    %v780 = vpack.c.b16 %v584, %v582
    %v781 = vpack.c.b16 %v587, %v585
    %v782 = vpack.c.b16 %v588, %v586
    %v783 = vpack.c.b16 %v591, %v589
    %v784 = vpack.c.b16 %v592, %v590
    %v785 = vpack.c.b16 %v595, %v593
    %v786 = vpack.c.b16 %v596, %v594
    %v787 = vpack.c.b16 %v599, %v597
    %v788 = vpack.c.b16 %v600, %v598
    %v789 = vpack.c.b16 %v603, %v601
    %v790 = vpack.c.b16 %v604, %v602
    %v791 = vpack.c.b16 %v607, %v605
    %v792 = vpack.c.b16 %v608, %v606
    %v793 = vpack.c.b16 %v611, %v609
    %v794 = vpack.c.b16 %v612, %v610
    %v795 = vpack.c.b16 %v615, %v613
    %v796 = vpack.c.b16 %v616, %v614
    %v797 = vpack.c.b16 %v619, %v617
    %v798 = vpack.c.b16 %v620, %v618
    %v799 = vpack.c.b16 %v623, %v621
    %v800 = vpack.c.b16 %v624, %v622
    %v801 = vpack.c.b16 %v627, %v625
    %v802 = vpack.c.b16 %v628, %v626
    %v803 = vpack.c.b16 %v631, %v629
    %v804 = vpack.c.b16 %v632, %v630
    %v805 = vpack.c.b16 %v635, %v633
    %v806 = vpack.c.b16 %v636, %v634
    %v807 = vpack.c.b16 %v639, %v637
    %v808 = vpack.c.b16 %v640, %v638
    %v809 = vpack.c.b16 %v643, %v641
    %v810 = vpack.c.b16 %v644, %v642
    %v811 = vpack.c.b16 %v647, %v645
    %v812 = vpack.c.b16 %v648, %v646
    %v813 = vpack.c.b16 %v651, %v649
    %v814 = vpack.c.b16 %v652, %v650
    %v815 = vpack.c.b16 %v655, %v653
    %v816 = vpack.c.b16 %v656, %v654
    %v817 = vpack.c.b16 %v659, %v657
    %v818 = vpack.c.b16 %v660, %v658
    %v819 = vpack.c.b16 %v663, %v661
    %v820 = vpack.c.b16 %v664, %v662
    %v821 = vpack.c.b16 %v667, %v665
    %v822 = vpack.c.b16 %v668, %v666
    %v823 = vpack.c.b16 %v671, %v669
    %v824 = vpack.c.b16 %v672, %v670
    %v825 = vpack.c.b16 %v675, %v673
    %v826 = vpack.c.b16 %v676, %v674
    %v827 = vpack.c.b16 %v679, %v677
    %v828 = vpack.c.b16 %v680, %v678
    %v829 = vpack.c.b16 %v683, %v681
    %v830 = vpack.c.b16 %v684, %v682
    %v831 = vpack.c.b16 %v687, %v685
    %v832 = vpack.c.b16 %v688, %v686
    %v833 = vpack.c.b16 %v691, %v689
    %v834 = vpack.c.b16 %v692, %v690
    %v835 = vpack.c.b16 %v695, %v693
    %v836 = vpack.c.b16 %v696, %v694
    %v837 = vpack.c.b16 %v699, %v697
    %v838 = vpack.c.b16 %v700, %v698
    %v839 = vpack.c.b16 %v703, %v701
    %v840 = vpack.c.b16 %v704, %v702
    %v841 = vpack.c.b16 %v707, %v705
    %v842 = vpack.c.b16 %v708, %v706
    %v843 = vpack.c.b16 %v711, %v709
    %v844 = vpack.c.b16 %v712, %v710
    %v845 = vpack.c.b16 %v715, %v713
    %v846 = vpack.c.b16 %v716, %v714
    %v847 = vpack.c.b16 %v719, %v717
    %v848 = vpack.c.b16 %v720, %v718
    %977 = vmatprep.subr.bf16.mxu0 %v722
    %978 = vmatpush1.bf16.msra.mxu0 %v721
    %979 = vmatprep.subr.bf16.mxu0 %v724
    %980 = vmatpush1.bf16.msra.mxu0 %v723
    %981 = vmatprep.subr.bf16.mxu0 %v726
    %982 = vmatpush1.bf16.msra.mxu0 %v725
    %983 = vmatprep.subr.bf16.mxu0 %v728
    %984 = vmatpush1.bf16.msra.mxu0 %v727
    %985 = vmatprep.subr.bf16.mxu0 %v730
    %986 = vmatpush1.bf16.msra.mxu0 %v729
    %987 = vmatprep.subr.bf16.mxu0 %v732
    %988 = vmatpush1.bf16.msra.mxu0 %v731
    %989 = vmatprep.subr.bf16.mxu0 %v734
    %990 = vmatpush1.bf16.msra.mxu0 %v733
    %991 = vmatprep.subr.bf16.mxu0 %v736
    %992 = vmatpush1.bf16.msra.mxu0 %v735
    %993 = vmatprep.subr.bf16.mxu0 %v738
    %994 = vmatpush1.bf16.msra.mxu0 %v737
    %995 = vmatprep.subr.bf16.mxu0 %v740
    %996 = vmatpush1.bf16.msra.mxu0 %v739
    %997 = vmatprep.subr.bf16.mxu0 %v742
    %998 = vmatpush1.bf16.msra.mxu0 %v741
    %999 = vmatprep.subr.bf16.mxu0 %v744
    %1000 = vmatpush1.bf16.msra.mxu0 %v743
    %1001 = vmatprep.subr.bf16.mxu0 %v746
    %1002 = vmatpush1.bf16.msra.mxu0 %v745
    %1003 = vmatprep.subr.bf16.mxu0 %v748
    %1004 = vmatpush1.bf16.msra.mxu0 %v747
    %1005 = vmatprep.subr.bf16.mxu0 %v750
    %1006 = vmatpush1.bf16.msra.mxu0 %v749
    %1007 = vmatprep.subr.bf16.mxu0 %v752
    %1008 = vmatpush1.bf16.msra.mxu0 %v751
    %1009 = vmatprep.mubr.bf16.mxu0 %v317
    %1010 = vmatmul.mubr.bf16.gmra.mrb[0].mxu0 %v303
    %v1011 = vpop.f32.mrb[0].mxu0
    %v1012 = vadd.f32 %v273, %v1011
    %v1013 = vpop.f32.mrb[0].mxu0
    %v1014 = vadd.f32 %v275, %v1013
    %v1015 = vpop.f32.mrb[0].mxu0
    %v1016 = vpop.f32.mrb[0].mxu0
    %1017 = vdwg.mxu0
    %1018 = vmatprep.subr.bf16.mxu0 %v754
    %1019 = vmatpush1.bf16.msra.mxu0 %v753
    %1020 = vmatprep.subr.bf16.mxu0 %v756
    %1021 = vmatpush1.bf16.msra.mxu0 %v755
    %1022 = vmatprep.subr.bf16.mxu0 %v758
    %1023 = vmatpush1.bf16.msra.mxu0 %v757
    %1024 = vmatprep.subr.bf16.mxu0 %v760
    %1025 = vmatpush1.bf16.msra.mxu0 %v759
    %1026 = vmatprep.subr.bf16.mxu0 %v762
    %1027 = vmatpush1.bf16.msra.mxu0 %v761
    %1028 = vmatprep.subr.bf16.mxu0 %v764
    %1029 = vmatpush1.bf16.msra.mxu0 %v763
    %1030 = vmatprep.subr.bf16.mxu0 %v766
    %1031 = vmatpush1.bf16.msra.mxu0 %v765
    %1032 = vmatprep.subr.bf16.mxu0 %v768
    %1033 = vmatpush1.bf16.msra.mxu0 %v767
    %1034 = vmatprep.subr.bf16.mxu0 %v770
    %1035 = vmatpush1.bf16.msra.mxu0 %v769
    %1036 = vmatprep.subr.bf16.mxu0 %v772
    %1037 = vmatpush1.bf16.msra.mxu0 %v771
    %1038 = vmatprep.subr.bf16.mxu0 %v774
    %1039 = vmatpush1.bf16.msra.mxu0 %v773
    %1040 = vmatprep.subr.bf16.mxu0 %v776
    %1041 = vmatpush1.bf16.msra.mxu0 %v775
    %1042 = vmatprep.subr.bf16.mxu0 %v778
    %1043 = vmatpush1.bf16.msra.mxu0 %v777
    %1044 = vmatprep.subr.bf16.mxu0 %v780
    %1045 = vmatpush1.bf16.msra.mxu0 %v779
    %1046 = vmatprep.subr.bf16.mxu0 %v782
    %1047 = vmatpush1.bf16.msra.mxu0 %v781
    %1048 = vmatprep.subr.bf16.mxu0 %v784
    %1049 = vmatpush1.bf16.msra.mxu0 %v783
    %1050 = vmatprep.mubr.bf16.mxu0 %v327
    %1051 = vmatmul.mubr.bf16.gmra.mrb[0].mxu0 %v325
    %v1052 = vpop.f32.mrb[0].mxu0
    %v1053 = vadd.f32 %v1012, %v1052
    %v1054 = vpop.f32.mrb[0].mxu0
    %v1055 = vadd.f32 %v1014, %v1054
    %v1056 = vpop.f32.mrb[0].mxu0
    %v1057 = vpop.f32.mrb[0].mxu0
    %1058 = vdwg.mxu0
    %1059 = vmatprep.subr.bf16.mxu0 %v786
    %1060 = vmatpush1.bf16.msra.mxu0 %v785
    %1061 = vmatprep.subr.bf16.mxu0 %v788
    %1062 = vmatpush1.bf16.msra.mxu0 %v787
    %1063 = vmatprep.subr.bf16.mxu0 %v790
    %1064 = vmatpush1.bf16.msra.mxu0 %v789
    %1065 = vmatprep.subr.bf16.mxu0 %v792
    %1066 = vmatpush1.bf16.msra.mxu0 %v791
    %1067 = vmatprep.subr.bf16.mxu0 %v794
    %1068 = vmatpush1.bf16.msra.mxu0 %v793
    %1069 = vmatprep.subr.bf16.mxu0 %v796
    %1070 = vmatpush1.bf16.msra.mxu0 %v795
    %1071 = vmatprep.subr.bf16.mxu0 %v798
    %1072 = vmatpush1.bf16.msra.mxu0 %v797
    %1073 = vmatprep.subr.bf16.mxu0 %v800
    %1074 = vmatpush1.bf16.msra.mxu0 %v799
    %1075 = vmatprep.subr.bf16.mxu0 %v802
    %1076 = vmatpush1.bf16.msra.mxu0 %v801
    %1077 = vmatprep.subr.bf16.mxu0 %v804
    %1078 = vmatpush1.bf16.msra.mxu0 %v803
    %1079 = vmatprep.subr.bf16.mxu0 %v806
    %1080 = vmatpush1.bf16.msra.mxu0 %v805
    %1081 = vmatprep.subr.bf16.mxu0 %v808
    %1082 = vmatpush1.bf16.msra.mxu0 %v807
    %1083 = vmatprep.subr.bf16.mxu0 %v810
    %1084 = vmatpush1.bf16.msra.mxu0 %v809
    %1085 = vmatprep.subr.bf16.mxu0 %v812
    %1086 = vmatpush1.bf16.msra.mxu0 %v811
    %1087 = vmatprep.subr.bf16.mxu0 %v814
    %1088 = vmatpush1.bf16.msra.mxu0 %v813
    %1089 = vmatprep.subr.bf16.mxu0 %v816
    %1090 = vmatpush1.bf16.msra.mxu0 %v815
    %1091 = vmatprep.mubr.bf16.mxu0 %v324
    %1092 = vmatmul.mubr.bf16.gmra.mrb[0].mxu0 %v310
    %v1093 = vpop.f32.mrb[0].mxu0
    %v1094 = vadd.f32 %v1053, %v1093
    %v1095 = vpop.f32.mrb[0].mxu0
    %v1096 = vadd.f32 %v1055, %v1095
    %v1097 = vpop.f32.mrb[0].mxu0
    %v1098 = vpop.f32.mrb[0].mxu0
    %1099 = vdwg.mxu0
    %1100 = vmatprep.subr.bf16.mxu0 %v818
    %1101 = vmatpush1.bf16.msra.mxu0 %v817
    %1102 = vmatprep.subr.bf16.mxu0 %v820
    %1103 = vmatpush1.bf16.msra.mxu0 %v819
    %1104 = vmatprep.subr.bf16.mxu0 %v822
    %1105 = vmatpush1.bf16.msra.mxu0 %v821
    %1106 = vmatprep.subr.bf16.mxu0 %v824
    %1107 = vmatpush1.bf16.msra.mxu0 %v823
    %1108 = vmatprep.subr.bf16.mxu0 %v826
    %1109 = vmatpush1.bf16.msra.mxu0 %v825
    %1110 = vmatprep.subr.bf16.mxu0 %v828
    %1111 = vmatpush1.bf16.msra.mxu0 %v827
    %1112 = vmatprep.subr.bf16.mxu0 %v830
    %1113 = vmatpush1.bf16.msra.mxu0 %v829
    %1114 = vmatprep.subr.bf16.mxu0 %v832
    %1115 = vmatpush1.bf16.msra.mxu0 %v831
    %1116 = vmatprep.subr.bf16.mxu0 %v834
    %1117 = vmatpush1.bf16.msra.mxu0 %v833
    %1118 = vmatprep.subr.bf16.mxu0 %v836
    %1119 = vmatpush1.bf16.msra.mxu0 %v835
    %1120 = vmatprep.subr.bf16.mxu0 %v838
    %1121 = vmatpush1.bf16.msra.mxu0 %v837
    %1122 = vmatprep.subr.bf16.mxu0 %v840
    %1123 = vmatpush1.bf16.msra.mxu0 %v839
    %1124 = vmatprep.subr.bf16.mxu0 %v842
    %1125 = vmatpush1.bf16.msra.mxu0 %v841
    %1126 = vmatprep.subr.bf16.mxu0 %v844
    %1127 = vmatpush1.bf16.msra.mxu0 %v843
    %1128 = vmatprep.subr.bf16.mxu0 %v846
    %1129 = vmatpush1.bf16.msra.mxu0 %v845
    %1130 = vmatprep.subr.bf16.mxu0 %v848
    %1131 = vmatpush1.bf16.msra.mxu0 %v847
    %1132 = vmatprep.mubr.bf16.mxu0 %v328
    %1133 = vmatmul.mubr.bf16.gmra.mrb[0].mxu0 %v326
    %v1134 = vpop.f32.mrb[0].mxu0
    %v1135 = vadd.f32 %v1094, %v1134
    %v1136 = vpop.f32.mrb[0].mxu0
    %v1137 = vadd.f32 %v1096, %v1136
    %v1138 = vpop.f32.mrb[0].mxu0
    %v1139 = vpop.f32.mrb[0].mxu0
    %1140 = vdwg.mxu0
    %v1141 = vld [vmem:[%s4] sm:$0x3]
    %v1143 = vlaneseq
    %v1144 = vshrl.u32 %v1143, 7
    %v1145 = vsub.s32 0, %v1144
    %v1146 = vrot.slane %v1141, %v1145
    %v1147 = vlaneseq
    %v1148 = vshrl.u32 %v1147, 7
    %v1149 = vsub.s32 1, %v1148
    %v1150 = vrot.slane %v1141, %v1149
    %v1153 = vadd.f32 %v1135, %v1146
    %v1154 = vadd.f32 %v1137, %v1150
    %v1155 = vpack.c.bf16 %v1153, %v1153
    %v1156 = vpack.c.bf16 %v1154, %v1154
    %v1157 = vld [vmem:[#allocation5] sm:$0xf]
    %v1158 = vld [vmem:[#allocation5 + $0x4] sm:$0xf]
    %v1159 = vld [vmem:[#allocation5 + $0x8] sm:$0xf]
    %v1160 = vld [vmem:[#allocation5 + $0xc] sm:$0xf]
    %v1161 = vld [vmem:[#allocation5 + $0x10] sm:$0xf]
    %v1162 = vld [vmem:[#allocation5 + $0x14] sm:$0xf]
    %v1163 = vld [vmem:[#allocation5 + $0x18] sm:$0xf]
    %v1164 = vld [vmem:[#allocation5 + $0x1c] sm:$0xf]
    %v1165 = vld [vmem:[#allocation5 + $0x20] sm:$0xf]
    %v1166 = vld [vmem:[#allocation5 + $0x24] sm:$0xf]
    %v1167 = vld [vmem:[#allocation5 + $0x28] sm:$0xf]
    %v1168 = vld [vmem:[#allocation5 + $0x2c] sm:$0xf]
    %v1169 = vld [vmem:[#allocation5 + $0x30] sm:$0xf]
    %v1170 = vld [vmem:[#allocation5 + $0x34] sm:$0xf]
    %v1171 = vld [vmem:[#allocation5 + $0x38] sm:$0xf]
    %v1172 = vld [vmem:[#allocation5 + $0x3c] sm:$0xf]
    %v1173 = vld [vmem:[#allocation5 + $0x40] sm:$0xf]
    %v1174 = vld [vmem:[#allocation5 + $0x44] sm:$0xf]
    %v1175 = vld [vmem:[#allocation5 + $0x48] sm:$0xf]
    %v1176 = vld [vmem:[#allocation5 + $0x4c] sm:$0xf]
    %v1177 = vld [vmem:[#allocation5 + $0x50] sm:$0xf]
    %v1178 = vld [vmem:[#allocation5 + $0x54] sm:$0xf]
    %v1179 = vld [vmem:[#allocation5 + $0x58] sm:$0xf]
    %v1180 = vld [vmem:[#allocation5 + $0x5c] sm:$0xf]
    %v1181 = vld [vmem:[#allocation5 + $0x60] sm:$0xf]
    %v1182 = vld [vmem:[#allocation5 + $0x64] sm:$0xf]
    %v1183 = vld [vmem:[#allocation5 + $0x68] sm:$0xf]
    %v1184 = vld [vmem:[#allocation5 + $0x6c] sm:$0xf]
    %v1185 = vld [vmem:[#allocation5 + $0x70] sm:$0xf]
    %v1186 = vld [vmem:[#allocation5 + $0x74] sm:$0xf]
    %v1187 = vld [vmem:[#allocation5 + $0x78] sm:$0xf]
    %v1188 = vld [vmem:[#allocation5 + $0x7c] sm:$0xf]
    %v1189 = vld [vmem:[%s6] sm:$0x1]
    %v1191 = vlaneseq
    %v1192 = vshrl.u32 %v1191, 7
    %v1193 = vsub.s32 0, %v1192
    %v1194 = vrot.slane %v1189, %v1193
    %v1228 = vunpack.c.l.b16 %v1157
    %v1229 = vunpack.c.l.b16 %v1158
    %v1230 = vunpack.c.l.b16 %v1159
    %v1231 = vunpack.c.l.b16 %v1160
    %v1232 = vunpack.c.l.b16 %v1161
    %v1233 = vunpack.c.l.b16 %v1162
    %v1234 = vunpack.c.l.b16 %v1163
    %v1235 = vunpack.c.l.b16 %v1164
    %v1236 = vunpack.c.l.b16 %v1165
    %v1237 = vunpack.c.l.b16 %v1166
    %v1238 = vunpack.c.l.b16 %v1167
    %v1239 = vunpack.c.l.b16 %v1168
    %v1240 = vunpack.c.l.b16 %v1169
    %v1241 = vunpack.c.l.b16 %v1170
    %v1242 = vunpack.c.l.b16 %v1171
    %v1243 = vunpack.c.l.b16 %v1172
    %v1244 = vunpack.c.l.b16 %v1173
    %v1245 = vunpack.c.l.b16 %v1174
    %v1246 = vunpack.c.l.b16 %v1175
    %v1247 = vunpack.c.l.b16 %v1176
    %v1248 = vunpack.c.l.b16 %v1177
    %v1249 = vunpack.c.l.b16 %v1178
    %v1250 = vunpack.c.l.b16 %v1179
    %v1251 = vunpack.c.l.b16 %v1180
    %v1252 = vunpack.c.l.b16 %v1181
    %v1253 = vunpack.c.l.b16 %v1182
    %v1254 = vunpack.c.l.b16 %v1183
    %v1255 = vunpack.c.l.b16 %v1184
    %v1256 = vunpack.c.l.b16 %v1185
    %v1257 = vunpack.c.l.b16 %v1186
    %v1258 = vunpack.c.l.b16 %v1187
    %v1259 = vunpack.c.l.b16 %v1188
    %v1260 = vpack.c.b16 %v1229, %v1228
    %v1261 = vpack.c.b16 %v1231, %v1230
    %v1262 = vpack.c.b16 %v1233, %v1232
    %v1263 = vpack.c.b16 %v1235, %v1234
    %v1264 = vpack.c.b16 %v1237, %v1236
    %v1265 = vpack.c.b16 %v1239, %v1238
    %v1266 = vpack.c.b16 %v1241, %v1240
    %v1267 = vpack.c.b16 %v1243, %v1242
    %v1268 = vpack.c.b16 %v1245, %v1244
    %v1269 = vpack.c.b16 %v1247, %v1246
    %v1270 = vpack.c.b16 %v1249, %v1248
    %v1271 = vpack.c.b16 %v1251, %v1250
    %v1272 = vpack.c.b16 %v1253, %v1252
    %v1273 = vpack.c.b16 %v1255, %v1254
    %v1274 = vpack.c.b16 %v1257, %v1256
    %v1275 = vpack.c.b16 %v1259, %v1258
    %1292 = vmatprep.subr.bf16.mxu0 0
    %1293 = vmatpush1.bf16.msra.mxu0 %v1260
    %1294 = vmatprep.subr.bf16.mxu0 0
    %1295 = vmatpush1.bf16.msra.mxu0 %v1261
    %1296 = vmatprep.subr.bf16.mxu0 0
    %1297 = vmatpush1.bf16.msra.mxu0 %v1262
    %1298 = vmatprep.subr.bf16.mxu0 0
    %1299 = vmatpush1.bf16.msra.mxu0 %v1263
    %1300 = vmatprep.subr.bf16.mxu0 0
    %1301 = vmatpush1.bf16.msra.mxu0 %v1264
    %1302 = vmatprep.subr.bf16.mxu0 0
    %1303 = vmatpush1.bf16.msra.mxu0 %v1265
    %1304 = vmatprep.subr.bf16.mxu0 0
    %1305 = vmatpush1.bf16.msra.mxu0 %v1266
    %1306 = vmatprep.subr.bf16.mxu0 0
    %1307 = vmatpush1.bf16.msra.mxu0 %v1267
    %1308 = vmatprep.subr.bf16.mxu0 0
    %1309 = vmatpush1.bf16.msra.mxu0 %v1268
    %1310 = vmatprep.subr.bf16.mxu0 0
    %1311 = vmatpush1.bf16.msra.mxu0 %v1269
    %1312 = vmatprep.subr.bf16.mxu0 0
    %1313 = vmatpush1.bf16.msra.mxu0 %v1270
    %1314 = vmatprep.subr.bf16.mxu0 0
    %1315 = vmatpush1.bf16.msra.mxu0 %v1271
    %1316 = vmatprep.subr.bf16.mxu0 0
    %1317 = vmatpush1.bf16.msra.mxu0 %v1272
    %1318 = vmatprep.subr.bf16.mxu0 0
    %1319 = vmatpush1.bf16.msra.mxu0 %v1273
    %1320 = vmatprep.subr.bf16.mxu0 0
    %1321 = vmatpush1.bf16.msra.mxu0 %v1274
    %1322 = vmatprep.subr.bf16.mxu0 0
    %1323 = vmatpush1.bf16.msra.mxu0 %v1275
    %1324 = vmatprep.mubr.bf16.mxu0 %v1156
    %1325 = vmatmul.mubr.bf16.gmra.mrb[0].mxu0 %v1155
    %v1326 = vpop.f32.mrb[0].mxu0
    %v1327 = vadd.f32 %v1194, %v1326
    %v1328 = vpop.f32.mrb[0].mxu0
    %v1329 = vpop.f32.mrb[0].mxu0
    %v1330 = vpop.f32.mrb[0].mxu0
    %1331 = vdwg.mxu0
    %v1332 = vpack.c.bf16 %v1327, %v1327
    %1333 = vst [vmem:[#allocation7] sm:$0x1] %v1332
    // Predicated region
    $region38: #{striatum_forward.1} parent=1 // pred_check
      _
    $region39: #{striatum_forward.1} parent=1 // pred_check_branch
      %1335 = sbr.rel (0) target = $region41
    $region40: #{striatum_forward.1} parent=1 // pred_region
      %s1337 = ssub.s32 16, 16
      %1338 = vsyncadd [#allocation4], %s1337
      %s1340 = sshll.u32 [#allocation7], 4
      %s1341 = int_to_ptr.vmem [resolvable:$true] %s1340
      %1343 = dma.vmem_to_hbm [thread:$0]  %s1341, 16, %s7, [#allocation4]
    $region41: #{striatum_forward.1} parent=1 // pred_fallthru
      _
    // Predicated region
    $region42: #{striatum_forward.1} parent=1 // pred_check
      _
    $region43: #{striatum_forward.1} parent=1 // pred_check_branch
      %1345 = sbr.rel (0) target = $region45
    $region44: #{striatum_forward.1} parent=1 // pred_region
      %1346 = dma.done [#allocation4], 16
    $region45: #{striatum_forward.1} parent=1 // pred_fallthru
      _
    %1347 = vsyncpa [#allocation3], 1
    %1348 = vsyncpa [#allocation6], 1
    %1349 = vsyncpa [#allocation4], 1

</llo_original>
